<compile_context>
chip_gen: v7x
topology: tpu7x:2x2x1
jax: 0.10.0
libtpu: 0.0.40
codegen_flags: <defaults>
</compile_context>

<pallas_src>
import jax
import jax.numpy as jnp
from jax import lax
from jax.experimental import pallas as pl
from jax.experimental.pallas import tpu as pltpu

BN_EPS = 1e-5
LN_EPS = 1e-5
LANE = 128


def _round_up(n, m):
    return ((n + m - 1) // m) * m


def _pad_last(a, target):
    pad = target - a.shape[-1]
    if pad == 0:
        return a
    return jnp.pad(a, [(0, 0)] * (a.ndim - 1) + [(0, pad)])


def _row(v, target):
    return _pad_last(v.reshape(1, -1).astype(jnp.float32), target)


def _vmem_limit_bytes():
    # ~65% of physical VMEM (v5e/v6e: 128 MiB -> ~83 MiB, v7x: 64 MiB -> ~41 MiB).
    # Conservative fallback that is safe on every generation.
    try:
        info = pltpu.get_tpu_info()
        cap = getattr(info, "vmem_capacity_bytes", None)
        if cap:
            return int(cap * 0.65)
    except Exception:
        pass
    return 40 * 1024 * 1024


def _pick_row_tile(L, pool, target):
    # Largest divisor of L <= target that keeps blocks (8,128)-legal; for pooling
    # the tile must be a multiple of 16 so the pooled tile stays a multiple of 8.
    step = 16 if pool else 8
    t0 = (min(target, L) // step) * step
    for t in range(t0, 0, -step):
        if L % t == 0:
            return t
    return L   # fallback: one tile per batch row (odd / awkward L)


# --------------------------------------------------------------------------- pass A
def _make_conv_kernel(K, C_in, TL, compute_dtype):
    """Conv1d tile via K accumulating MXU matmuls + BN moment partials."""
    def kernel(x_ref, w_ref, b_ref, y_ref, mom_ref):
        j = pl.program_id(1)
        row0 = j * TL
        if TL % 8 == 0:
            row0 = pl.multiple_of(row0, 8)
        xv = x_ref.at[0]                                     # (L+2p, C_in) view
        acc = None
        for k in range(K):                                   # in-kernel im2col
            xk = xv[pl.ds(row0 + k, TL), :].astype(compute_dtype)   # (TL, C_in)
            part = jnp.dot(xk, w_ref[k], preferred_element_type=jnp.float32)
            acc = part if acc is None else acc + part
        y = acc + b_ref[...]                                 # (TL, C_pad) f32
        yq = y.astype(y_ref.dtype)
        y_ref[0] = yq
        # BN moment partials from exactly the values pass B will normalize.
        # TODO(synk): E[x^2]-E[x]^2 can cancel when |mean| >> std; shifted sums
        # would be more robust for deep stacks.
        c32 = yq.astype(jnp.float32)
        mom_ref[:, 0:1, :] = jnp.sum(c32, axis=0, keepdims=True)[None]
        mom_ref[:, 1:2, :] = jnp.sum(c32 * c32, axis=0, keepdims=True)[None]
    return kernel


# --------------------------------------------------------------------------- pass B
def _make_norm_pool_kernel(C_out, C_in, C_pad, TL, To, p, pool, identity_res,
                           compute_dtype):
    """Folded BN -> ELU -> LayerNorm -> + residual -> AvgPool1d(3,2,1)."""
    inv_c = 1.0 / float(C_out)
    inv3 = 1.0 / 3.0

    def kernel(*refs):
        if identity_res:
            (y_ref, x_ref, bns_ref, bnt_ref, lng_ref, lnb_ref, *rest) = refs
            wres_ref = bres_ref = None
        else:
            (y_ref, x_ref, bns_ref, bnt_ref, lng_ref, lnb_ref,
             wres_ref, bres_ref, *rest) = refs
        if pool:
            out_ref, scr = rest
        else:
            (out_ref,) = rest

        bns, bnt = bns_ref[...], bnt_ref[...]
        lng, lnb = lng_ref[...], lnb_ref[...]
        cmask = (lax.broadcasted_iota(jnp.int32, (1, C_pad), 1) < C_out
                 ).astype(jnp.float32)

        def fused_rows(y_rows, x_rows):
            # y_rows: (n, C_pad) conv output (f32); x_rows: (n, C_in) raw input (f32)
            bn = y_rows * bns + bnt
            # ELU(alpha=1); exp-arg clamp keeps the unselected branch finite.
            act = jnp.where(bn > 0, bn, jnp.exp(jnp.minimum(bn, 0.0)) - 1.0)
            # LayerNorm over the real C_out channels (padded lanes are exactly 0).
            lmu = jnp.sum(act, axis=-1, keepdims=True) * inv_c
            cent = (act - lmu) * cmask
            lvar = jnp.sum(cent * cent, axis=-1, keepdims=True) * inv_c
            ln = cent * lax.rsqrt(lvar + LN_EPS) * lng + lnb
            if identity_res:
                if C_in == C_pad:
                    res = x_rows
                else:
                    res = jnp.concatenate(
                        [x_rows, jnp.zeros((x_rows.shape[0], C_pad - C_in),
                                           jnp.float32)], axis=-1)
            else:
                res = jnp.dot(x_rows.astype(compute_dtype), wres_ref[...],
                              preferred_element_type=jnp.float32) + bres_ref[...]
            return ln + res

        j = pl.program_id(1)
        row0 = j * TL
        if TL % 8 == 0:
            row0 = pl.multiple_of(row0, 8)

        yv = y_ref.at[0]                                      # (L,  C_pad) view
        xv = x_ref.at[0]                                      # (L+2p, C_in) view
        y_tile = yv[pl.ds(row0, TL), :].astype(jnp.float32)
        x_tile = xv[pl.ds(row0 + p, TL), :].astype(jnp.float32)
        s = fused_rows(y_tile, x_tile)                        # (TL, C_pad)

        if not pool:
            out_ref[0] = s.astype(out_ref.dtype)
            return

        # AvgPool1d(3, stride=2, padding=1, count_include_pad): one recomputed halo
        # row (global row row0-1; the pool's left zero pad for the first tile),
        # aligned slab stores, 3 strided reads.
        h = jnp.maximum(row0 - 1, 0)
        yh = yv[pl.ds(h, 1), :].astype(jnp.float32)
        xh = xv[pl.ds(h + p, 1), :].astype(jnp.float32)
        sh = jnp.where(row0 == 0, 0.0, fused_rows(yh, xh))    # (1, C_pad)

        scr[pl.ds(8, TL), :] = s                              # aligned tile store
        scr[7:8, :] = sh                                      # single halo row
        scr[8 + TL:9 + TL, :] = jnp.zeros((1, C_pad), jnp.float32)  # right zero pad
        pooled = (scr[pl.ds(7, To, 2), :]
                  + scr[pl.ds(8, To, 2), :]
                  + scr[pl.ds(9, To, 2), :]) * inv3
        out_ref[0] = pooled.astype(out_ref.dtype)

    return kernel


# ------------------------------------------------------------------------- wrapper
def residual_block_1d(x, params, *, kernel_size, pool=True,
                      compute_dtype=jnp.bfloat16, row_tile=None):
    """x: (B, C_in, L) float32 -> (B, C_out, L_out), matching the torch module.

    compute_dtype sets the MXU operand dtype (bf16 native on v6e/v7x); statistics
    and normalization math stay in float32.
    """
    conv_w, conv_b, bn_g, bn_b, ln_g, ln_b, res_w, res_b = params
    B, C_in, L = x.shape
    C_out = conv_w.shape[0]
    K = kernel_size
    assert K % 2 == 1, "length-preserving Conv1d requires odd kernel_size"
    p = K // 2
    C_pad = _round_up(C_out, LANE)            # lane-dense channel dim
    identity_res = res_w is None              # identity residual (in_ch == out_ch)
    f32 = jnp.float32

    vmem_limit = _vmem_limit_bytes()
    if row_tile is None:                      # bigger tiles on 128-MiB-VMEM parts
        row_tile = 512 if vmem_limit > 64 * 1024 * 1024 else 256
    TL = _pick_row_tile(L, pool, row_tile)
    nT = L // TL
    L_out = (L - 1) // 2 + 1 if pool else L
    assert L_out % nT == 0
    To = L_out // nT

    # channels-last + conv halo pad along L (the only wrapper-side activation copy).
    # TODO(synk): for stacked blocks keep activations channels-last end-to-end and
    # hoist this transpose / the final one out of the block.
    xt = jnp.transpose(x, (0, 2, 1)).astype(f32)               # (B, L, C_in)
    x_pad = jnp.pad(xt, ((0, 0), (p, p), (0, 0)))              # (B, L+2p, C_in)
    Lp = L + 2 * p

    # conv weights as (K, C_in, C_pad) taps, zero-padded output lanes.
    w = _pad_last(jnp.transpose(conv_w, (2, 1, 0)).astype(f32), C_pad)
    w = w.astype(compute_dtype)
    b = _row(conv_b, C_pad)

    y_item = jnp.dtype(compute_dtype).itemsize
    cost_a = pl.CostEstimate(
        flops=int(2 * B * L * K * C_in * C_pad),
        transcendentals=0,
        bytes_accessed=int(x_pad.size * 4 + B * L * C_pad * y_item
                           + B * nT * 2 * C_pad * 4 + w.size * y_item))

    # ---- pass A: conv matmuls + BN moment partials.
    y, moments = pl.pallas_call(
        _make_conv_kernel(K, C_in, TL, compute_dtype),
        out_shape=(jax.ShapeDtypeStruct((B, L, C_pad), compute_dtype),
                   jax.ShapeDtypeStruct((B * nT, 2, C_pad), f32)),
        grid=(B, nT),
        in_specs=[pl.BlockSpec((1, Lp, C_in), lambda bb, jj: (bb, 0, 0)),
                  pl.BlockSpec((K, C_in, C_pad), lambda bb, jj: (0, 0, 0)),
                  pl.BlockSpec((1, C_pad), lambda bb, jj: (0, 0))],
        out_specs=(pl.BlockSpec((1, TL, C_pad), lambda bb, jj: (bb, jj, 0)),
                   pl.BlockSpec((1, 2, C_pad),
                                lambda bb, jj: (bb * nT + jj, 0, 0))),
        compiler_params=pltpu.CompilerParams(
            dimension_semantics=("parallel", "parallel"),
            vmem_limit_bytes=vmem_limit),
        cost_estimate=cost_a,
    )(x_pad, w, b)

    # ---- fold BatchNorm (training-mode batch stats, biased variance) into a
    #      per-channel scale/shift.
    tot = jnp.sum(moments, axis=0)                             # (2, C_pad)
    n = float(B * L)
    mean = tot[0:1, :] / n
    var = jnp.maximum(tot[1:2, :] / n - mean * mean, 0.0)
    bn_scale = _row(bn_g, C_pad) * lax.rsqrt(var + BN_EPS)
    bn_shift = _row(bn_b, C_pad) - mean * bn_scale
    ln_gp, ln_bp = _row(ln_g, C_pad), _row(ln_b, C_pad)

    ins = [y, x_pad, bn_scale, bn_shift, ln_gp, ln_bp]
    in_specs = [pl.BlockSpec((1, L, C_pad), lambda bb, jj: (bb, 0, 0)),
                pl.BlockSpec((1, Lp, C_in), lambda bb, jj: (bb, 0, 0)),
                pl.BlockSpec((1, C_pad), lambda bb, jj: (0, 0)),
                pl.BlockSpec((1, C_pad), lambda bb, jj: (0, 0)),
                pl.BlockSpec((1, C_pad), lambda bb, jj: (0, 0)),
                pl.BlockSpec((1, C_pad), lambda bb, jj: (0, 0))]
    if not identity_res:
        w_res = _pad_last(jnp.transpose(res_w[:, :, 0], (1, 0)).astype(f32), C_pad)
        ins += [w_res.astype(compute_dtype), _row(res_b, C_pad)]
        in_specs += [pl.BlockSpec((C_in, C_pad), lambda bb, jj: (0, 0)),
                     pl.BlockSpec((1, C_pad), lambda bb, jj: (0, 0))]

    scratch = [pltpu.VMEM((TL + 16, C_pad), f32)] if pool else []
    cost_b = pl.CostEstimate(
        flops=int(B * L * C_pad * 12
                  + (0 if identity_res else 2 * B * L * C_in * C_pad)),
        transcendentals=int(B * L * C_pad),
        bytes_accessed=int(B * L * C_pad * y_item + x_pad.size * 4
                           + B * L_out * C_pad * 4))

    # ---- pass B: BN + ELU + LN + residual add + AvgPool.
    out_blc = pl.pallas_call(
        _make_norm_pool_kernel(C_out, C_in, C_pad, TL, To, p, pool,
                               identity_res, compute_dtype),
        out_shape=jax.ShapeDtypeStruct((B, L_out, C_pad), f32),
        grid=(B, nT),
        in_specs=in_specs,
        out_specs=pl.BlockSpec((1, To, C_pad), lambda bb, jj: (bb, jj, 0)),
        scratch_shapes=scratch,
        compiler_params=pltpu.CompilerParams(
            dimension_semantics=("parallel", "parallel"),
            vmem_limit_bytes=vmem_limit),
        cost_estimate=cost_b,
    )(*ins)

    return jnp.transpose(out_blc[:, :, :C_out], (0, 2, 1))     # (B, C_out, L_out)


# ------------------------------------------------------------------------ reference
def reference(x, params, *, kernel_size, pool=True):
    """Pure-JAX mirror of the PyTorch forward (for correctness checking)."""
    conv_w, conv_b, bn_g, bn_b, ln_g, ln_b, res_w, res_b = params
    K = kernel_size
    dn = ("NCH", "OIH", "NCH")
    out = lax.conv_general_dilated(x, conv_w, (1,), [(K // 2, K // 2)],
                                   dimension_numbers=dn) + conv_b[None, :, None]
    mu = out.mean(axis=(0, 2), keepdims=True)
    var = ((out - mu) ** 2).mean(axis=(0, 2), keepdims=True)
    out = (out - mu) / jnp.sqrt(var + BN_EPS) * bn_g[None, :, None] + bn_b[None, :, None]
    out = jnp.where(out > 0, out, jnp.exp(jnp.minimum(out, 0.0)) - 1.0)
    a = jnp.transpose(out, (0, 2, 1))
    lmu = a.mean(-1, keepdims=True)
    lvar = ((a - lmu) ** 2).mean(-1, keepdims=True)
    a = (a - lmu) / jnp.sqrt(lvar + LN_EPS) * ln_g + ln_b
    out = jnp.transpose(a, (0, 2, 1))
    if res_w is None:
        res = x
    else:
        res = lax.conv_general_dilated(x, res_w, (1,), [(0, 0)],
                                       dimension_numbers=dn) + res_b[None, :, None]
    if pool:
        def avgpool(y):
            Lc = y.shape[-1]
            Lo = (Lc - 1) // 2 + 1
            yp = jnp.pad(y, ((0, 0), (0, 0), (1, 1)))
            return (yp[:, :, 0:2 * Lo:2] + yp[:, :, 1:2 * Lo + 1:2]
                    + yp[:, :, 2:2 * Lo + 2:2]) / 3.0
        out, res = avgpool(out), avgpool(res)
    return out + res


if __name__ == "__main__":
    import numpy as np

    key = jax.random.PRNGKey(0)

    def make_params(k, C_in, C_out, K, identity_res):
        ks = jax.random.split(k, 8)
        conv_w = 0.3 * jax.random.normal(ks[0], (C_out, C_in, K), jnp.float32)
        conv_b = 0.1 * jax.random.normal(ks[1], (C_out,), jnp.float32)
        bn_g = 1.0 + 0.1 * jax.random.normal(ks[2], (C_out,), jnp.float32)
        bn_b = 0.1 * jax.random.normal(ks[3], (C_out,), jnp.float32)
        ln_g = 1.0 + 0.1 * jax.random.normal(ks[4], (C_out,), jnp.float32)
        ln_b = 0.1 * jax.random.normal(ks[5], (C_out,), jnp.float32)
        if identity_res:
            res_w, res_b = None, None
        else:
            res_w = 0.3 * jax.random.normal(ks[6], (C_out, C_in, 1), jnp.float32)
            res_b = 0.1 * jax.random.normal(ks[7], (C_out,), jnp.float32)
        return (conv_w, conv_b, bn_g, bn_b, ln_g, ln_b, res_w, res_b)

    k1, k2, k3, k4 = jax.random.split(key, 4)

    # config 1: channel-changing residual 1x1 conv + AvgPool (the common case)
    B, C_in, C_out, L, K = 2, 4, 8, 16, 3
    params = make_params(k1, C_in, C_out, K, identity_res=False)
    x = jax.random.normal(k2, (B, C_in, L), jnp.float32)
    ref = reference(x, params, kernel_size=K, pool=True)

    out = jax.block_until_ready(
        residual_block_1d(x, params, kernel_size=K, pool=True,
                          compute_dtype=jnp.float32))
    assert out.shape == (B, C_out, (L - 1) // 2 + 1)
    np.testing.assert_allclose(np.asarray(out), np.asarray(ref),
                               rtol=2e-3, atol=2e-3)

    out_bf16 = jax.block_until_ready(
        residual_block_1d(x, params, kernel_size=K, pool=True,
                          compute_dtype=jnp.bfloat16))
    np.testing.assert_allclose(np.asarray(out_bf16), np.asarray(ref),
                               rtol=5e-2, atol=5e-2)

    # config 2: identity residual (C_in == C_out) and no pooling
    B2, C2, L2, K2 = 2, 8, 16, 3
    params2 = make_params(k3, C2, C2, K2, identity_res=True)
    x2 = jax.random.normal(k4, (B2, C2, L2), jnp.float32)
    ref2 = reference(x2, params2, kernel_size=K2, pool=False)
    out2 = jax.block_until_ready(
        residual_block_1d(x2, params2, kernel_size=K2, pool=False,
                          compute_dtype=jnp.float32))
    assert out2.shape == (B2, C2, L2)
    np.testing.assert_allclose(np.asarray(out2), np.asarray(ref2),
                               rtol=2e-3, atol=2e-3)

    print("KERNEL_OK")
</pallas_src>

<mosaic_0001>
module attributes {stable_mosaic.version = 11 : i64} {
  func.func @kernel(%arg0: i32, %arg1: i32, %arg2: memref<1x18x4xf32, #tpu.memory_space<vmem>>, %arg3: memref<3x4x128xf32, #tpu.memory_space<vmem>>, %arg4: memref<1x128xf32, #tpu.memory_space<vmem>>, %arg5: memref<1x16x128xf32, #tpu.memory_space<vmem>>, %arg6: memref<1x2x128xf32, #tpu.memory_space<vmem>>) attributes {dimension_semantics = [#tpu.dimension_semantics<parallel>, #tpu.dimension_semantics<parallel>], iteration_bounds = array<i64: 2, 1>, scalar_prefetch = 0 : i64, scratch_operands = 0 : i64, tpu.core_type = #tpu.core_type<tc>, window_params = [{transform_indices = @transform_0, window_bounds = array<i64: 1, 18, 4>}, {pipeline_mode = #tpu.pipeline_mode<synchronous>, transform_indices = @transform_1, window_bounds = array<i64: 3, 4, 128>}, {pipeline_mode = #tpu.pipeline_mode<synchronous>, transform_indices = @transform_2, window_bounds = array<i64: 1, 128>}, {transform_indices = @transform_3, window_bounds = array<i64: 1, 16, 128>}, {transform_indices = @transform_4, window_bounds = array<i64: 1, 2, 128>}]} {
    %c16_i32 = arith.constant 16 : i32
    %0 = arith.muli %arg1, %c16_i32 : i32
    %1 = tpu.assume_multiple %0, 8 : i32
    %c0_i32 = arith.constant 0 : i32
    %2 = arith.addi %1, %c0_i32 : i32
    %c0_i32_0 = arith.constant 0 : i32
    %c0_i32_1 = arith.constant 0 : i32
    %c0_i32_2 = arith.constant 0 : i32
    %3 = tpu.memref_slice %arg2[%c0_i32_0, %c0_i32_1, %c0_i32_2] : memref<1x18x4xf32, #tpu.memory_space<vmem>> -> memref<1x18x4xf32, #tpu.memory_space<vmem>>
    %4 = tpu.memref_squeeze %3 : memref<1x18x4xf32, #tpu.memory_space<vmem>> -> memref<18x4xf32, #tpu.memory_space<vmem>>
    %5 = arith.index_cast %2 : i32 to index
    %c0 = arith.constant 0 : index
    %6 = vector.load %4[%5, %c0] : memref<18x4xf32, #tpu.memory_space<vmem>>, vector<16x4xf32>
    %c0_3 = arith.constant 0 : index
    %c0_4 = arith.constant 0 : index
    %c0_5 = arith.constant 0 : index
    %7 = vector.load %arg3[%c0_3, %c0_4, %c0_5] : memref<3x4x128xf32, #tpu.memory_space<vmem>>, vector<1x4x128xf32>
    %8 = vector.shape_cast %7 : vector<1x4x128xf32> to vector<4x128xf32>
    %cst = arith.constant dense<0.000000e+00> : vector<16x128xf32>
    %9 = tpu.matmul %6, %8, %cst {dimension_numbers = #tpu.dot_dimension_numbers<[1], [0], [0], [1], [0, 0, 1, 1], [], []>} : vector<16x4xf32>, vector<4x128xf32>, vector<16x128xf32> -> vector<16x128xf32>
    %c1_i32 = arith.constant 1 : i32
    %10 = arith.addi %1, %c1_i32 : i32
    %c0_i32_6 = arith.constant 0 : i32
    %c0_i32_7 = arith.constant 0 : i32
    %c0_i32_8 = arith.constant 0 : i32
    %11 = tpu.memref_slice %arg2[%c0_i32_6, %c0_i32_7, %c0_i32_8] : memref<1x18x4xf32, #tpu.memory_space<vmem>> -> memref<1x18x4xf32, #tpu.memory_space<vmem>>
    %12 = tpu.memref_squeeze %11 : memref<1x18x4xf32, #tpu.memory_space<vmem>> -> memref<18x4xf32, #tpu.memory_space<vmem>>
    %13 = arith.index_cast %10 : i32 to index
    %c0_9 = arith.constant 0 : index
    %14 = vector.load %12[%13, %c0_9] : memref<18x4xf32, #tpu.memory_space<vmem>>, vector<16x4xf32>
    %c1 = arith.constant 1 : index
    %c0_10 = arith.constant 0 : index
    %c0_11 = arith.constant 0 : index
    %15 = vector.load %arg3[%c1, %c0_10, %c0_11] : memref<3x4x128xf32, #tpu.memory_space<vmem>>, vector<1x4x128xf32>
    %16 = vector.shape_cast %15 : vector<1x4x128xf32> to vector<4x128xf32>
    %cst_12 = arith.constant dense<0.000000e+00> : vector<16x128xf32>
    %17 = tpu.matmul %14, %16, %cst_12 {dimension_numbers = #tpu.dot_dimension_numbers<[1], [0], [0], [1], [0, 0, 1, 1], [], []>} : vector<16x4xf32>, vector<4x128xf32>, vector<16x128xf32> -> vector<16x128xf32>
    %18 = arith.addf %9, %17 : vector<16x128xf32>
    %c2_i32 = arith.constant 2 : i32
    %19 = arith.addi %1, %c2_i32 : i32
    %c0_i32_13 = arith.constant 0 : i32
    %c0_i32_14 = arith.constant 0 : i32
    %c0_i32_15 = arith.constant 0 : i32
    %20 = tpu.memref_slice %arg2[%c0_i32_13, %c0_i32_14, %c0_i32_15] : memref<1x18x4xf32, #tpu.memory_space<vmem>> -> memref<1x18x4xf32, #tpu.memory_space<vmem>>
    %21 = tpu.memref_squeeze %20 : memref<1x18x4xf32, #tpu.memory_space<vmem>> -> memref<18x4xf32, #tpu.memory_space<vmem>>
    %22 = arith.index_cast %19 : i32 to index
    %c0_16 = arith.constant 0 : index
    %23 = vector.load %21[%22, %c0_16] : memref<18x4xf32, #tpu.memory_space<vmem>>, vector<16x4xf32>
    %c2 = arith.constant 2 : index
    %c0_17 = arith.constant 0 : index
    %c0_18 = arith.constant 0 : index
    %24 = vector.load %arg3[%c2, %c0_17, %c0_18] : memref<3x4x128xf32, #tpu.memory_space<vmem>>, vector<1x4x128xf32>
    %25 = vector.shape_cast %24 : vector<1x4x128xf32> to vector<4x128xf32>
    %cst_19 = arith.constant dense<0.000000e+00> : vector<16x128xf32>
    %26 = tpu.matmul %23, %25, %cst_19 {dimension_numbers = #tpu.dot_dimension_numbers<[1], [0], [0], [1], [0, 0, 1, 1], [], []>} : vector<16x4xf32>, vector<4x128xf32>, vector<16x128xf32> -> vector<16x128xf32>
    %27 = arith.addf %18, %26 : vector<16x128xf32>
    %c0_20 = arith.constant 0 : index
    %c0_21 = arith.constant 0 : index
    %28 = vector.load %arg4[%c0_20, %c0_21] : memref<1x128xf32, #tpu.memory_space<vmem>>, vector<1x128xf32>
    %29 = vector.broadcast %28 : vector<1x128xf32> to vector<16x128xf32>
    %30 = arith.addf %27, %29 : vector<16x128xf32>
    %c0_22 = arith.constant 0 : index
    %c0_23 = arith.constant 0 : index
    %c0_24 = arith.constant 0 : index
    %31 = vector.load %arg5[%c0_22, %c0_23, %c0_24] : memref<1x16x128xf32, #tpu.memory_space<vmem>>, vector<1x16x128xf32>
    %32 = vector.shape_cast %31 : vector<1x16x128xf32> to vector<16x128xf32>
    %33 = vector.shape_cast %30 : vector<16x128xf32> to vector<1x16x128xf32>
    tpu.vector_store %arg5[%c0_22, %c0_23, %c0_24], %33 {strides = array<i32>} : memref<1x16x128xf32, #tpu.memory_space<vmem>>, vector<1x16x128xf32>,
    %cst_25 = arith.constant dense<0.000000e+00> : vector<128xf32>
    %34 = vector.multi_reduction <add>, %30, %cst_25 [0] : vector<16x128xf32> to vector<128xf32>
    %35 = vector.shape_cast %34 : vector<128xf32> to vector<1x128xf32>
    %36 = vector.shape_cast %35 : vector<1x128xf32> to vector<1x1x128xf32>
    %c0_26 = arith.constant 0 : index
    %c0_27 = arith.constant 0 : index
    %c0_28 = arith.constant 0 : index
    %37 = vector.load %arg6[%c0_26, %c0_27, %c0_28] : memref<1x2x128xf32, #tpu.memory_space<vmem>>, vector<1x1x128xf32>
    tpu.vector_store %arg6[%c0_26, %c0_27, %c0_28], %36 {strides = array<i32>} : memref<1x2x128xf32, #tpu.memory_space<vmem>>, vector<1x1x128xf32>,
    %38 = arith.mulf %30, %30 : vector<16x128xf32>
    %cst_29 = arith.constant dense<0.000000e+00> : vector<128xf32>
    %39 = vector.multi_reduction <add>, %38, %cst_29 [0] : vector<16x128xf32> to vector<128xf32>
    %40 = vector.shape_cast %39 : vector<128xf32> to vector<1x128xf32>
    %41 = vector.shape_cast %40 : vector<1x128xf32> to vector<1x1x128xf32>
    %c0_30 = arith.constant 0 : index
    %c1_31 = arith.constant 1 : index
    %c0_32 = arith.constant 0 : index
    %42 = vector.load %arg6[%c0_30, %c1_31, %c0_32] : memref<1x2x128xf32, #tpu.memory_space<vmem>>, vector<1x1x128xf32>
    tpu.vector_store %arg6[%c0_30, %c1_31, %c0_32], %41 {strides = array<i32>} : memref<1x2x128xf32, #tpu.memory_space<vmem>>, vector<1x1x128xf32>,
    return
  }
  func.func @transform_0(%arg0: i32, %arg1: i32) -> (i32, i32, i32) {
    %c0_i32 = arith.constant 0 : i32
    %c0_i32_0 = arith.constant 0 : i32
    %c0_i32_1 = arith.constant 0 : i32
    return %arg0, %c0_i32, %c0_i32_0 : i32, i32, i32
  }
  func.func @transform_1(%arg0: i32, %arg1: i32) -> (i32, i32, i32) {
    %c0_i32 = arith.constant 0 : i32
    %c0_i32_0 = arith.constant 0 : i32
    %c0_i32_1 = arith.constant 0 : i32
    %c0_i32_2 = arith.constant 0 : i32
    return %c0_i32, %c0_i32_0, %c0_i32_1 : i32, i32, i32
  }
  func.func @transform_2(%arg0: i32, %arg1: i32) -> (i32, i32) {
    %c0_i32 = arith.constant 0 : i32
    %c0_i32_0 = arith.constant 0 : i32
    %c0_i32_1 = arith.constant 0 : i32
    return %c0_i32, %c0_i32_0 : i32, i32
  }
  func.func @transform_3(%arg0: i32, %arg1: i32) -> (i32, i32, i32) {
    %c0_i32 = arith.constant 0 : i32
    %c0_i32_0 = arith.constant 0 : i32
    return %arg0, %arg1, %c0_i32 : i32, i32, i32
  }
  func.func @transform_4(%arg0: i32, %arg1: i32) -> (i32, i32, i32) {
    %c1_i32 = arith.constant 1 : i32
    %0 = arith.muli %arg0, %c1_i32 : i32
    %1 = arith.addi %0, %arg1 : i32
    %c0_i32 = arith.constant 0 : i32
    %c0_i32_0 = arith.constant 0 : i32
    %c0_i32_1 = arith.constant 0 : i32
    return %1, %c0_i32, %c0_i32_0 : i32, i32, i32
  }
}

</mosaic_0001>

<llo_original>
// kernel: tpu_custom_call.1
$region0: #{tpu_custom_call.1}
  #allocation0 [shape = 'u32[]', space=smem, size = 0x4, offset = 0x4, fixed_abs, tag = 'smem constant byte address 0x4 - core index']
  #allocation1 [shape = 'u32[144,128]{1,0:T(1,128)}', space=vmem, size = 0x12000, scoped, tag = 'internal scratch']
  %s0 = inlined_call_operand.vmem [shape: f32[2,18,4], index: 0, kind: input, shape index: {}]
  %s1 = inlined_call_operand.vmem [shape: f32[3,4,128], index: 1, kind: input, shape index: {}]
  %s2 = inlined_call_operand.vmem [shape: f32[1,128], index: 2, kind: input, shape index: {}]
  %s3 = inlined_call_operand.hbm [shape: f32[2,16,128], index: 3, kind: output, shape index: {0}]
  %s4 = inlined_call_operand.hbm [shape: f32[2,2,128], index: 4, kind: output, shape index: {1}]
  %5 = xla_tuple %s3, %s4
  %s6 = sld [smem:[#allocation0]]
  $region53: #{tpu_custom_call.1} parent=0
    _
  %s8 = ssub.s32 1, %s6
  %s9 = scalar_select 0, %s8, %s6
  $region1: #{tpu_custom_call.1} parent=0
    #allocation2 [shape = 'u8[16384]{0}', space=vmem, size = 0x4000, scoped, tag = 'output window, operand 0']
    #allocation3 [shape = 's32[2]{0}', space=sflag, size = 0x8, scoped, tag = 'scoped memory for tpu_custom_call.1']
    #allocation4 [shape = 'u8[2048]{0}', space=vmem, size = 0x800, scoped, tag = 'output window, operand 1']
    #allocation5 [shape = 's32[2]{0}', space=sflag, size = 0x8, scoped, tag = 'scoped memory for tpu_custom_call.1']
    %10 = vsyncpa [#allocation3], 0
    %s11 = scalar_lea.sflag [#allocation3], 1
    %12 = vsyncpa %s11, 0
    %13 = vsyncpa [#allocation5], 0
    %s14 = scalar_lea.sflag [#allocation5], 1
    %15 = vsyncpa %s14, 0
    loop: start=0, step=1, limit=4
    $region2: #{tpu_custom_call.1} parent=1 // loop_pre_header
      _
    $region3: #{tpu_custom_call.1} parent=1 // loop_header
      %s17 = sphi 0, %s21
      %p18 = scmp.ge.s32.totalorder %s17, 4
      %s24 = sphi 0, %s36
      %s25 = sphi 0, %s32
      %s26 = sphi 0, %s24
      %s27 = sphi 0, %s25
      %s28 = sphi 0, %s26
      %s29 = sphi 0, %s27
      %s39 = sphi 0, %s41
      %s42 = sphi 0, %s39
      %s43 = sphi 0, %s42
      %s59 = sphi 0, %s43
      %s63 = sphi 0, %s63
      %s65 = sphi 0, %s63
      %s66 = sphi 0, %s65
      %s80 = sphi 0, %s66
      %s84 = sphi 0, %s84
      %s86 = sphi 0, %s84
      %s87 = sphi 0, %s86
      %s101 = sphi 0, %s87
      %s109 = sphi 0, %s111
      %s112 = sphi 0, %s109
      %s113 = sphi 0, %s112
      %s129 = sphi 0, %s113
      %s137 = sphi 0, %s139
      %s140 = sphi 0, %s137
      %s141 = sphi 0, %s140
      %s157 = sphi 0, %s141
    $region4: #{tpu_custom_call.1} parent=1 // loop_header_branch
      %20 = sbr.rel (%p18) target = $region8
    $region5: #{tpu_custom_call.1} parent=1 // loop_body
      %s22 = ssub.s32 %s17, 1
      %s23 = ssub.s32 %s17, 2
      %s30 = sadd.s32 1, %s25
      %p31 = scmp.ge.s32.totalorder %s30, 1
      %s32 = scalar_select %p31, 0, %s30
      %s33 = sadd.s32 1, %s24
      %s34 = scalar_select %p31, %s33, %s24
      %p35 = scmp.ge.s32.totalorder %s34, 2
      %s36 = scalar_select %p35, 0, %s34
      %s37 = ssub.s32 %s24, %s36
      %p38 = scmp.eq.s32.totalorder %s37, 0
      %s40 = sadd.s32 %s39, 1
      %s41 = scalar_select %p38, %s39, %s40
      %p44 = pneg %p38
      %p45 = scmp.eq.s32.totalorder %s17, 1
      %p46 = por %p44, %p45
      %p47 = scmp.ne.s32.totalorder %s39, %s42
      %p48 = scmp.eq.s32.totalorder %s17, 0
      %p49 = por %p47, %p48
      %p50 = scmp.ne.s32.totalorder %s39, %s42
      %p51 = scmp.eq.s32.totalorder %s22, 1
      %p52 = por %p50, %p51
      %p53 = scmp.ne.s32.totalorder %s42, %s43
      %p54 = scmp.eq.s32.totalorder %s22, 0
      %p55 = por %p53, %p54
      %p56 = scmp.ne.s32.totalorder %s42, %s43
      %p57 = scmp.eq.s32.totalorder %s23, 1
      %p58 = por %p56, %p57
      %p60 = scmp.ne.s32.totalorder %s43, %s59
      %p61 = scmp.eq.s32.totalorder %s23, 0
      %p62 = por %p60, %p61
      %s64 = sadd.s32 %s63, 1
      %p67 = scmp.eq.s32.totalorder %s17, 1
      %p68 = scmp.ne.s32.totalorder %s63, %s65
      %p69 = scmp.eq.s32.totalorder %s17, 0
      %p70 = por %p68, %p69
      %p71 = scmp.ne.s32.totalorder %s63, %s65
      %p72 = scmp.eq.s32.totalorder %s22, 1
      %p73 = por %p71, %p72
      %p74 = scmp.ne.s32.totalorder %s65, %s66
      %p75 = scmp.eq.s32.totalorder %s22, 0
      %p76 = por %p74, %p75
      %p77 = scmp.ne.s32.totalorder %s65, %s66
      %p78 = scmp.eq.s32.totalorder %s23, 1
      %p79 = por %p77, %p78
      %p81 = scmp.ne.s32.totalorder %s66, %s80
      %p82 = scmp.eq.s32.totalorder %s23, 0
      %p83 = por %p81, %p82
      %s85 = sadd.s32 %s84, 1
      %p88 = scmp.eq.s32.totalorder %s17, 1
      %p89 = scmp.ne.s32.totalorder %s84, %s86
      %p90 = scmp.eq.s32.totalorder %s17, 0
      %p91 = por %p89, %p90
      %p92 = scmp.ne.s32.totalorder %s84, %s86
      %p93 = scmp.eq.s32.totalorder %s22, 1
      %p94 = por %p92, %p93
      %p95 = scmp.ne.s32.totalorder %s86, %s87
      %p96 = scmp.eq.s32.totalorder %s22, 0
      %p97 = por %p95, %p96
      %p98 = scmp.ne.s32.totalorder %s86, %s87
      %p99 = scmp.eq.s32.totalorder %s23, 1
      %p100 = por %p98, %p99
      %p102 = scmp.ne.s32.totalorder %s87, %s101
      %p103 = scmp.eq.s32.totalorder %s23, 0
      %p104 = por %p102, %p103
      %s105 = ssub.s32 %s24, %s36
      %s106 = ssub.s32 %s25, %s32
      %s107 = sor.u32 %s105, %s106
      %p108 = scmp.eq.s32.totalorder %s107, 0
      %s110 = sadd.s32 %s109, 1
      %s111 = scalar_select %p108, %s109, %s110
      %p114 = pneg %p108
      %p115 = scmp.eq.s32.totalorder %s17, 1
      %p116 = por %p114, %p115
      %p117 = scmp.ne.s32.totalorder %s109, %s112
      %p118 = scmp.eq.s32.totalorder %s17, 0
      %p119 = por %p117, %p118
      %p120 = scmp.ne.s32.totalorder %s109, %s112
      %p121 = scmp.eq.s32.totalorder %s22, 1
      %p122 = por %p120, %p121
      %p123 = scmp.ne.s32.totalorder %s112, %s113
      %p124 = scmp.eq.s32.totalorder %s22, 0
      %p125 = por %p123, %p124
      %p126 = scmp.ne.s32.totalorder %s112, %s113
      %p127 = scmp.eq.s32.totalorder %s23, 1
      %p128 = por %p126, %p127
      %p130 = scmp.ne.s32.totalorder %s113, %s129
      %p131 = scmp.eq.s32.totalorder %s23, 0
      %p132 = por %p130, %p131
      %s133 = sadd.s32 %s24, %s25
      %s134 = sadd.s32 %s36, %s32
      %s135 = ssub.s32 %s133, %s134
      %p136 = scmp.eq.s32.totalorder %s135, 0
      %s138 = sadd.s32 %s137, 1
      %s139 = scalar_select %p136, %s137, %s138
      %p142 = pneg %p136
      %p143 = scmp.eq.s32.totalorder %s17, 1
      %p144 = por %p142, %p143
      %p145 = scmp.ne.s32.totalorder %s137, %s140
      %p146 = scmp.eq.s32.totalorder %s17, 0
      %p147 = por %p145, %p146
      %p148 = scmp.ne.s32.totalorder %s137, %s140
      %p149 = scmp.eq.s32.totalorder %s22, 1
      %p150 = por %p148, %p149
      %p151 = scmp.ne.s32.totalorder %s140, %s141
      %p152 = scmp.eq.s32.totalorder %s22, 0
      %p153 = por %p151, %p152
      %p154 = scmp.ne.s32.totalorder %s140, %s141
      %p155 = scmp.eq.s32.totalorder %s23, 1
      %p156 = por %p154, %p155
      %p158 = scmp.ne.s32.totalorder %s141, %s157
      %p159 = scmp.eq.s32.totalorder %s23, 0
      %p160 = por %p158, %p159
      %p161 = scmp.le.s32.totalorder 1, %s17
      %p162 = scmp.lt.s32.totalorder %s17, 3
      %p163 = pnand %p161, %p162
      %p164 = pneg %p163
      // Predicated region
      $region9: #{tpu_custom_call.1} parent=5 // pred_check
        _
      $region10: #{tpu_custom_call.1} parent=5 // pred_check_branch
        %166 = sbr.rel (%p163) target = $region12
      $region11: #{tpu_custom_call.1} parent=5 // pred_region
        %s167 = ssub.s32 %s17, 1
        // Predicated region
        $region13: #{tpu_custom_call.1} parent=11 // pred_check
          %p168 = pneg %p76
        $region14: #{tpu_custom_call.1} parent=11 // pred_check_branch
          %170 = sbr.rel (%p168) target = $region16
        $region15: #{tpu_custom_call.1} parent=11 // pred_region
          _
        $region16: #{tpu_custom_call.1} parent=11 // pred_fallthru
          _
        // Predicated region
        $region17: #{tpu_custom_call.1} parent=11 // pred_check
          %p171 = pneg %p97
        $region18: #{tpu_custom_call.1} parent=11 // pred_check_branch
          %173 = sbr.rel (%p171) target = $region20
        $region19: #{tpu_custom_call.1} parent=11 // pred_region
          _
        $region20: #{tpu_custom_call.1} parent=11 // pred_fallthru
          _
      $region12: #{tpu_custom_call.1} parent=5 // pred_fallthru
        _
      %p174 = scmp.lt.s32.totalorder %s17, 2
      // Predicated region
      $region21: #{tpu_custom_call.1} parent=5 // pred_check
        %p175 = pneg %p174
      $region22: #{tpu_custom_call.1} parent=5 // pred_check_branch
        %177 = sbr.rel (%p175) target = $region24
      $region23: #{tpu_custom_call.1} parent=5 // pred_region
        // Predicated region
        $region25: #{tpu_custom_call.1} parent=23 // pred_check
          %p178 = pneg %p49
        $region26: #{tpu_custom_call.1} parent=23 // pred_check_branch
          %180 = sbr.rel (%p178) target = $region28
        $region27: #{tpu_custom_call.1} parent=23 // pred_region
          %p181 = scmp.lt.s32.totalorder %s24, 1
          %s182 = scalar_select %p181, %s24, 1
          %s183 = smul.addr %s182, 3
          %s184 = smul.addr %s183, 8
          %s185 = scalar_lea.vmem %s0, %s184
        $region28: #{tpu_custom_call.1} parent=23 // pred_fallthru
          _
      $region24: #{tpu_custom_call.1} parent=5 // pred_fallthru
        _
      %p186 = scmp.le.s32.totalorder 1, %s17
      %p187 = scmp.lt.s32.totalorder %s17, 3
      %p188 = pnand %p186, %p187
      %p189 = pneg %p188
      // Predicated region
      $region29: #{tpu_custom_call.1} parent=5 // pred_check
        _
      $region30: #{tpu_custom_call.1} parent=5 // pred_check_branch
        %191 = sbr.rel (%p188) target = $region32
      $region31: #{tpu_custom_call.1} parent=5 // pred_region
        %s192 = ssub.s32 %s17, 1
        %p193 = scmp.lt.s32.totalorder %s26, 1
        %s194 = scalar_select %p193, %s26, 1
        %s195 = smul.addr %s194, 3
        %s196 = smul.addr %s195, 8
        %s197 = scalar_lea.vmem %s0, %s196
        %p198 = pneg %p55
        %p199 = pneg %p52
        %p200 = pneg %p76
        %p201 = pneg %p73
        %p202 = pneg %p97
        %p203 = pneg %p94
        %p204 = pneg %p125
        %p205 = pneg %p122
        %s206 = sand.u32 %s112, 1
        %s207 = scalar_lea.sflag [#allocation3], %s206
        %s208 = sand.u32 %s112, 1
        %s209 = smul.addr %s208, 16
        %s210 = scalar_lea.vmem [#allocation2], %s209
        %p211 = pneg %p153
        %p212 = pneg %p150
        %s213 = sand.u32 %s140, 1
        %s214 = scalar_lea.sflag [#allocation5], %s213
        %s215 = sand.u32 %s140, 1
        %s216 = smul.addr %s215, 2
        %s217 = scalar_lea.vmem [#allocation4], %s216
        %p218 = scmp.lt.s32.totalorder %s26, 1
        %s219 = scalar_select %p218, %s26, 1
        %s220 = smul.addr %s219, 3
        %s221 = smul.addr %s220, 8
        %s222 = scalar_lea.vmem %s0, %s221
        %s223 = smul.u32 2, %s27
        %s224 = sadd.s32 %s26, %s27
        %s225 = smul.u32 %s27, 16
        %s226 = scalar_lea.vmem %s222, %s225
        %v227 = vld [vmem:[%s226] sm:$0xff]
        %v228 = vld [vmem:[%s226 + $0x8] sm:$0xff]
        %v229 = vld [vmem:[%s1] sm:$0xf]
        %s230 = sadd.s32 %s225, 1
        %s231 = scalar_lea.vmem %s222, %s230
        %v232 = vld [vmem:[%s231] sm:$0xff]
        %v233 = vld [vmem:[%s231 + $0x8] sm:$0xff]
        %s234 = scalar_lea.vmem %s1, 4
        %v235 = vld [vmem:[%s234] sm:$0xf]
        %vm236 = vcmask 31744
        %v238 = vsel %vm236, %v232, 0
        %v241 = vsel %vm236, %v233, 0
        %vm243 = vcmask 1043456
        %v245 = vsel %vm243, %v235, 0
        %247 = vmatprep.subr.mxu0 0.0
        %248 = vmatpush1.msra.mxu0 %v245
        %249 = vmatprep.subr.mxu0 0.0
        %250 = vmatpush1.msra.mxu0 0.0
        %251 = vmatprep.subr.mxu0 0.0
        %252 = vmatpush1.msra.mxu0 0.0
        %253 = vmatprep.subr.mxu0 0.0
        %254 = vmatpush1.msra.mxu0 0.0
        %255 = vmatprep.subr.mxu0 0.0
        %256 = vmatpush1.msra.mxu0 0.0
        %257 = vmatprep.subr.mxu0 0.0
        %258 = vmatpush1.msra.mxu0 0.0
        %259 = vmatprep.subr.mxu0 0.0
        %260 = vmatpush1.msra.mxu0 0.0
        %261 = vmatprep.subr.mxu0 0.0
        %262 = vmatpush1.msra.mxu0 0.0
        %263 = vmatprep.subr.mxu0 0.0
        %264 = vmatpush1.msra.mxu0 0.0
        %265 = vmatprep.subr.mxu0 0.0
        %266 = vmatpush1.msra.mxu0 0.0
        %267 = vmatprep.subr.mxu0 0.0
        %268 = vmatpush1.msra.mxu0 0.0
        %269 = vmatprep.subr.mxu0 0.0
        %270 = vmatpush1.msra.mxu0 0.0
        %271 = vmatprep.subr.mxu0 0.0
        %272 = vmatpush1.msra.mxu0 0.0
        %273 = vmatprep.subr.mxu0 0.0
        %274 = vmatpush1.msra.mxu0 0.0
        %275 = vmatprep.subr.mxu0 0.0
        %276 = vmatpush1.msra.mxu0 0.0
        %277 = vmatprep.subr.mxu0 0.0
        %278 = vmatpush1.msra.mxu0 0.0
        %279 = vmatprep.subr.mxu0 0.0
        %280 = vmatpush1.msra.mxu0 0.0
        %281 = vmatprep.subr.mxu0 0.0
        %282 = vmatpush1.msra.mxu0 0.0
        %283 = vmatprep.subr.mxu0 0.0
        %284 = vmatpush1.msra.mxu0 0.0
        %285 = vmatprep.subr.mxu0 0.0
        %286 = vmatpush1.msra.mxu0 0.0
        %287 = vmatprep.subr.mxu0 0.0
        %288 = vmatpush1.msra.mxu0 0.0
        %289 = vmatprep.subr.mxu0 0.0
        %290 = vmatpush1.msra.mxu0 0.0
        %291 = vmatprep.subr.mxu0 0.0
        %292 = vmatpush1.msra.mxu0 0.0
        %293 = vmatprep.subr.mxu0 0.0
        %294 = vmatpush1.msra.mxu0 0.0
        %295 = vmatprep.subr.mxu0 0.0
        %296 = vmatpush1.msra.mxu0 0.0
        %297 = vmatprep.subr.mxu0 0.0
        %298 = vmatpush1.msra.mxu0 0.0
        %299 = vmatprep.subr.mxu0 0.0
        %300 = vmatpush1.msra.mxu0 0.0
        %301 = vmatprep.subr.mxu0 0.0
        %302 = vmatpush1.msra.mxu0 0.0
        %303 = vmatprep.subr.mxu0 0.0
        %304 = vmatpush1.msra.mxu0 0.0
        %305 = vmatprep.subr.mxu0 0.0
        %306 = vmatpush1.msra.mxu0 0.0
        %307 = vmatprep.subr.mxu0 0.0
        %308 = vmatpush1.msra.mxu0 0.0
        %309 = vmatprep.subr.mxu0 0.0
        %310 = vmatpush1.msra.mxu0 0.0
        %311 = vmatprep.mubr.f32.mxu0 0.0
        %312 = vmatmul.mubr.f32.gmra.mrb[0].mxu0 %v238
        %v313 = vpop.f32.mrb[0].mxu0
        %v314 = vadd.f32 0.0, %v313
        %v315 = vpop.f32.mrb[0].mxu0
        %316 = vmatprep.mubr.f32.mxu0 0.0
        %317 = vmatmul.mubr.f32.gmra.mrb[0].mxu0 %v241
        %v318 = vpop.f32.mrb[0].mxu0
        %v319 = vadd.f32 0.0, %v318
        %v320 = vpop.f32.mrb[0].mxu0
        %321 = vdwg.mxu0
        %v323 = vsel %vm236, %v227, 0
        %v326 = vsel %vm236, %v228, 0
        %v329 = vsel %vm243, %v229, 0
        %331 = vmatprep.subr.mxu0 0.0
        %332 = vmatpush1.msra.mxu0 %v329
        %333 = vmatprep.subr.mxu0 0.0
        %334 = vmatpush1.msra.mxu0 0.0
        %335 = vmatprep.subr.mxu0 0.0
        %336 = vmatpush1.msra.mxu0 0.0
        %337 = vmatprep.subr.mxu0 0.0
        %338 = vmatpush1.msra.mxu0 0.0
        %339 = vmatprep.subr.mxu0 0.0
        %340 = vmatpush1.msra.mxu0 0.0
        %341 = vmatprep.subr.mxu0 0.0
        %342 = vmatpush1.msra.mxu0 0.0
        %343 = vmatprep.subr.mxu0 0.0
        %344 = vmatpush1.msra.mxu0 0.0
        %345 = vmatprep.subr.mxu0 0.0
        %346 = vmatpush1.msra.mxu0 0.0
        %347 = vmatprep.subr.mxu0 0.0
        %348 = vmatpush1.msra.mxu0 0.0
        %349 = vmatprep.subr.mxu0 0.0
        %350 = vmatpush1.msra.mxu0 0.0
        %351 = vmatprep.subr.mxu0 0.0
        %352 = vmatpush1.msra.mxu0 0.0
        %353 = vmatprep.subr.mxu0 0.0
        %354 = vmatpush1.msra.mxu0 0.0
        %355 = vmatprep.subr.mxu0 0.0
        %356 = vmatpush1.msra.mxu0 0.0
        %357 = vmatprep.subr.mxu0 0.0
        %358 = vmatpush1.msra.mxu0 0.0
        %359 = vmatprep.subr.mxu0 0.0
        %360 = vmatpush1.msra.mxu0 0.0
        %361 = vmatprep.subr.mxu0 0.0
        %362 = vmatpush1.msra.mxu0 0.0
        %363 = vmatprep.subr.mxu0 0.0
        %364 = vmatpush1.msra.mxu0 0.0
        %365 = vmatprep.subr.mxu0 0.0
        %366 = vmatpush1.msra.mxu0 0.0
        %367 = vmatprep.subr.mxu0 0.0
        %368 = vmatpush1.msra.mxu0 0.0
        %369 = vmatprep.subr.mxu0 0.0
        %370 = vmatpush1.msra.mxu0 0.0
        %371 = vmatprep.subr.mxu0 0.0
        %372 = vmatpush1.msra.mxu0 0.0
        %373 = vmatprep.subr.mxu0 0.0
        %374 = vmatpush1.msra.mxu0 0.0
        %375 = vmatprep.subr.mxu0 0.0
        %376 = vmatpush1.msra.mxu0 0.0
        %377 = vmatprep.subr.mxu0 0.0
        %378 = vmatpush1.msra.mxu0 0.0
        %379 = vmatprep.subr.mxu0 0.0
        %380 = vmatpush1.msra.mxu0 0.0
        %381 = vmatprep.subr.mxu0 0.0
        %382 = vmatpush1.msra.mxu0 0.0
        %383 = vmatprep.subr.mxu0 0.0
        %384 = vmatpush1.msra.mxu0 0.0
        %385 = vmatprep.subr.mxu0 0.0
        %386 = vmatpush1.msra.mxu0 0.0
        %387 = vmatprep.subr.mxu0 0.0
        %388 = vmatpush1.msra.mxu0 0.0
        %389 = vmatprep.subr.mxu0 0.0
        %390 = vmatpush1.msra.mxu0 0.0
        %391 = vmatprep.subr.mxu0 0.0
        %392 = vmatpush1.msra.mxu0 0.0
        %393 = vmatprep.subr.mxu0 0.0
        %394 = vmatpush1.msra.mxu0 0.0
        %395 = vmatprep.mubr.f32.mxu0 0.0
        %396 = vmatmul.mubr.f32.gmra.mrb[0].mxu0 %v323
        %v397 = vpop.f32.mrb[0].mxu0
        %v398 = vadd.f32 %v314, %v397
        %v399 = vpop.f32.mrb[0].mxu0
        %400 = vmatprep.mubr.f32.mxu0 0.0
        %401 = vmatmul.mubr.f32.gmra.mrb[0].mxu0 %v326
        %v402 = vpop.f32.mrb[0].mxu0
        %v403 = vadd.f32 %v319, %v402
        %v404 = vpop.f32.mrb[0].mxu0
        %405 = vdwg.mxu0
        %s406 = sadd.s32 %s225, 2
        %s407 = scalar_lea.vmem %s222, %s406
        %v408 = vld [vmem:[%s407] sm:$0xff]
        %v409 = vld [vmem:[%s407 + $0x8] sm:$0xff]
        %s410 = scalar_lea.vmem %s1, 8
        %v411 = vld [vmem:[%s410] sm:$0xf]
        %v413 = vsel %vm236, %v408, 0
        %v416 = vsel %vm236, %v409, 0
        %v419 = vsel %vm243, %v411, 0
        %421 = vmatprep.subr.mxu0 0.0
        %422 = vmatpush1.msra.mxu0 %v419
        %423 = vmatprep.subr.mxu0 0.0
        %424 = vmatpush1.msra.mxu0 0.0
        %425 = vmatprep.subr.mxu0 0.0
        %426 = vmatpush1.msra.mxu0 0.0
        %427 = vmatprep.subr.mxu0 0.0
        %428 = vmatpush1.msra.mxu0 0.0
        %429 = vmatprep.subr.mxu0 0.0
        %430 = vmatpush1.msra.mxu0 0.0
        %431 = vmatprep.subr.mxu0 0.0
        %432 = vmatpush1.msra.mxu0 0.0
        %433 = vmatprep.subr.mxu0 0.0
        %434 = vmatpush1.msra.mxu0 0.0
        %435 = vmatprep.subr.mxu0 0.0
        %436 = vmatpush1.msra.mxu0 0.0
        %437 = vmatprep.subr.mxu0 0.0
        %438 = vmatpush1.msra.mxu0 0.0
        %439 = vmatprep.subr.mxu0 0.0
        %440 = vmatpush1.msra.mxu0 0.0
        %441 = vmatprep.subr.mxu0 0.0
        %442 = vmatpush1.msra.mxu0 0.0
        %443 = vmatprep.subr.mxu0 0.0
        %444 = vmatpush1.msra.mxu0 0.0
        %445 = vmatprep.subr.mxu0 0.0
        %446 = vmatpush1.msra.mxu0 0.0
        %447 = vmatprep.subr.mxu0 0.0
        %448 = vmatpush1.msra.mxu0 0.0
        %449 = vmatprep.subr.mxu0 0.0
        %450 = vmatpush1.msra.mxu0 0.0
        %451 = vmatprep.subr.mxu0 0.0
        %452 = vmatpush1.msra.mxu0 0.0
        %453 = vmatprep.subr.mxu0 0.0
        %454 = vmatpush1.msra.mxu0 0.0
        %455 = vmatprep.subr.mxu0 0.0
        %456 = vmatpush1.msra.mxu0 0.0
        %457 = vmatprep.subr.mxu0 0.0
        %458 = vmatpush1.msra.mxu0 0.0
        %459 = vmatprep.subr.mxu0 0.0
        %460 = vmatpush1.msra.mxu0 0.0
        %461 = vmatprep.subr.mxu0 0.0
        %462 = vmatpush1.msra.mxu0 0.0
        %463 = vmatprep.subr.mxu0 0.0
        %464 = vmatpush1.msra.mxu0 0.0
        %465 = vmatprep.subr.mxu0 0.0
        %466 = vmatpush1.msra.mxu0 0.0
        %467 = vmatprep.subr.mxu0 0.0
        %468 = vmatpush1.msra.mxu0 0.0
        %469 = vmatprep.subr.mxu0 0.0
        %470 = vmatpush1.msra.mxu0 0.0
        %471 = vmatprep.subr.mxu0 0.0
        %472 = vmatpush1.msra.mxu0 0.0
        %473 = vmatprep.subr.mxu0 0.0
        %474 = vmatpush1.msra.mxu0 0.0
        %475 = vmatprep.subr.mxu0 0.0
        %476 = vmatpush1.msra.mxu0 0.0
        %477 = vmatprep.subr.mxu0 0.0
        %478 = vmatpush1.msra.mxu0 0.0
        %479 = vmatprep.subr.mxu0 0.0
        %480 = vmatpush1.msra.mxu0 0.0
        %481 = vmatprep.subr.mxu0 0.0
        %482 = vmatpush1.msra.mxu0 0.0
        %483 = vmatprep.subr.mxu0 0.0
        %484 = vmatpush1.msra.mxu0 0.0
        %485 = vmatprep.mubr.f32.mxu0 0.0
        %486 = vmatmul.mubr.f32.gmra.mrb[0].mxu0 %v413
        %v487 = vpop.f32.mrb[0].mxu0
        %v488 = vadd.f32 0.0, %v487
        %v489 = vpop.f32.mrb[0].mxu0
        %490 = vmatprep.mubr.f32.mxu0 0.0
        %491 = vmatmul.mubr.f32.gmra.mrb[0].mxu0 %v416
        %v492 = vpop.f32.mrb[0].mxu0
        %v493 = vadd.f32 0.0, %v492
        %v494 = vpop.f32.mrb[0].mxu0
        %495 = vdwg.mxu0
        %v496 = vadd.f32 %v398, %v488
        %v497 = vadd.f32 %v403, %v493
        %v498 = vld [vmem:[%s2] sm:$0x1]
        %v500 = vlaneseq
        %v501 = vshrl.u32 %v500, 7
        %v502 = vsub.s32 0, %v501
        %v503 = vrot.slane %v498, %v502
        %v505 = vadd.f32 %v496, %v503
        %v506 = vadd.f32 %v497, %v503
        %507 = vst [vmem:[%s210] sm:$0xff] %v505
        %508 = vst [vmem:[%s210 + $0x8] sm:$0xff] %v506
        %v509 = vadd.f32 %v505, %v506
        %v510 = vrot.slane %v509, 4
        %v511 = vadd.f32 %v509, %v510
        %v512 = vrot.slane %v511, 2
        %v513 = vadd.f32 %v511, %v512
        %v514 = vrot.slane %v513, 1
        %v515 = vadd.f32 %v513, %v514
        %516 = vst [vmem:[%s217] sm:$0x1] %v515
        %v517 = vmul.f32 %v505, %v505
        %v518 = vmul.f32 %v506, %v506
        %v519 = vadd.f32 %v517, %v518
        %v520 = vrot.slane %v519, 4
        %v521 = vadd.f32 %v519, %v520
        %v522 = vrot.slane %v521, 2
        %v523 = vadd.f32 %v521, %v522
        %v524 = vrot.slane %v523, 1
        %v525 = vadd.f32 %v523, %v524
        %526 = vst [vmem:[%s217 + $0x1] sm:$0x1] %v525
        %s527 = sand.u32 %s112, 1
        %s528 = scalar_lea.sflag [#allocation3], %s527
        %s529 = sand.u32 %s112, 1
        %s530 = smul.addr %s529, 16
        %s531 = scalar_lea.vmem [#allocation2], %s530
        %s532 = sand.u32 %s140, 1
        %s533 = scalar_lea.sflag [#allocation5], %s532
        %s534 = sand.u32 %s140, 1
        %s535 = smul.addr %s534, 2
        %s536 = scalar_lea.vmem [#allocation4], %s535
        // Predicated region
        $region33: #{tpu_custom_call.1} parent=31 // pred_check
          %p537 = pneg %p122
        $region34: #{tpu_custom_call.1} parent=31 // pred_check_branch
          %539 = sbr.rel (%p537) target = $region36
        $region35: #{tpu_custom_call.1} parent=31 // pred_region
          %s540 = smul.u32 2, %s27
          %s542 = ssub.s32 256, 256
          %543 = vsyncadd %s528, %s542
          %s544 = smul.addr %s26, 2
          %s545 = sadd.s32 %s540, %s544
          %s546 = smul.addr %s545, 128
          %s547 = scalar_lea.hbm %s3, %s546
          %s548 = sshll.u32 %s531, 4
          %s549 = int_to_ptr.vmem [resolvable:$true] %s548
          %554 = dma.vmem_to_hbm [thread:$0]  %s549, 256, %s547, %s528, 128, 128, 8
        $region36: #{tpu_custom_call.1} parent=31 // pred_fallthru
          _
        // Predicated region
        $region37: #{tpu_custom_call.1} parent=31 // pred_check
          %p555 = pneg %p150
        $region38: #{tpu_custom_call.1} parent=31 // pred_check_branch
          %557 = sbr.rel (%p555) target = $region40
        $region39: #{tpu_custom_call.1} parent=31 // pred_region
          %s558 = sadd.s32 %s26, %s27
          %s560 = ssub.s32 32, 32
          %561 = vsyncadd %s533, %s560
          %s562 = smul.addr %s558, 32
          %s563 = scalar_lea.hbm %s4, %s562
          %s565 = sshll.u32 %s536, 4
          %s566 = int_to_ptr.vmem [resolvable:$true] %s565
          %568 = dma.vmem_to_hbm [thread:$0]  %s566, 32, %s563, %s533
        $region40: #{tpu_custom_call.1} parent=31 // pred_fallthru
          _
      $region32: #{tpu_custom_call.1} parent=5 // pred_fallthru
        _
      %p569 = scmp.le.s32.totalorder 2, %s17
      // Predicated region
      $region41: #{tpu_custom_call.1} parent=5 // pred_check
        %p570 = pneg %p569
      $region42: #{tpu_custom_call.1} parent=5 // pred_check_branch
        %572 = sbr.rel (%p570) target = $region44
      $region43: #{tpu_custom_call.1} parent=5 // pred_region
        %s573 = ssub.s32 %s17, 2
        // Predicated region
        $region45: #{tpu_custom_call.1} parent=43 // pred_check
          %p574 = pneg %p128
        $region46: #{tpu_custom_call.1} parent=43 // pred_check_branch
          %576 = sbr.rel (%p574) target = $region48
        $region47: #{tpu_custom_call.1} parent=43 // pred_region
          %s577 = sand.u32 %s113, 1
          %s578 = scalar_lea.sflag [#allocation3], %s577
          %s579 = sand.u32 %s113, 1
          %s580 = smul.addr %s579, 16
          %s581 = scalar_lea.vmem [#allocation2], %s580
          %582 = dma.done %s578, 256
        $region48: #{tpu_custom_call.1} parent=43 // pred_fallthru
          _
        // Predicated region
        $region49: #{tpu_custom_call.1} parent=43 // pred_check
          %p583 = pneg %p156
        $region50: #{tpu_custom_call.1} parent=43 // pred_check_branch
          %585 = sbr.rel (%p583) target = $region52
        $region51: #{tpu_custom_call.1} parent=43 // pred_region
          %s586 = sand.u32 %s141, 1
          %s587 = scalar_lea.sflag [#allocation5], %s586
          %s588 = sand.u32 %s141, 1
          %s589 = smul.addr %s588, 2
          %s590 = scalar_lea.vmem [#allocation4], %s589
          %591 = dma.done %s587, 32
        $region52: #{tpu_custom_call.1} parent=43 // pred_fallthru
          _
      $region44: #{tpu_custom_call.1} parent=5 // pred_fallthru
        _
    $region6: #{tpu_custom_call.1} parent=1 // loop_footer
      %s21 = sadd.s32 1, %s17
    $region7: #{tpu_custom_call.1} parent=1 // loop_footer_branch
      %16 = sbr.rel target = $region3
    $region8: #{tpu_custom_call.1} parent=1 // loop_exit
      _
    %592 = vsyncpa [#allocation3], 1
    %s593 = scalar_lea.sflag [#allocation3], 1
    %594 = vsyncpa %s593, 1
    %595 = vsyncpa [#allocation5], 1
    %s596 = scalar_lea.sflag [#allocation5], 1
    %597 = vsyncpa %s596, 1

</llo_original>
